<compile_context>
chip_gen: v5e
topology: v5e:2x2
jax: 0.10.0
libtpu: 0.0.40
codegen_flags: <defaults>
</compile_context>

<pallas_src>
import jax
import jax.numpy as jnp
from jax import lax
from jax.experimental import pallas as pl
from jax.experimental.pallas import tpu as pltpu

# ----------------------------- config (toy scale) -----------------------------
B = 2              # batch
C_IN = 3           # image channels
H = W = 16         # image spatial (original: 224)
C1 = 64            # surrogate stem channels (resnet stem: 64)
C_FEAT = 128       # backbone output channels (original layer1: 256)
E = 128            # dim_embedding (lane-dense so the output store is unmasked)
HP, WP = H // 4, W // 4
S = HP * WP        # Linear in_features = (H/4)^2   (original: (224/4)^2 = 3136)
KTAPS = 9 * C_IN   # conv1 im2col contraction: 3x3 taps x C_IN
OUT_DTYPE = jnp.bfloat16   # bf16 store halves the dominant HBM traffic; use f32 if needed


# ----------------------------- fused Pallas kernel -----------------------------
def _encoder_kernel(taps_ref, w1_ref, b1_ref, w2_ref, b2_ref, wl_ref, bl_ref, o_ref):
    """Whole CNNEncoder3 forward in one invocation (no grid).

    taps_ref: [KTAPS, 4*B*S] bf16  conv1 taps; lane = p*(B*S) + b*S + ph*WP + pw,
                                   p = 2*s + t is the 2x2-pool parity of conv1
                                   output pixel (oh, ow) = (2*ph+s, 2*pw+t)
    w1_ref  : [C1, KTAPS]    bf16  conv1 weight (transposed)
    b1_ref  : [C1, 1]        f32
    w2_ref  : [C_FEAT, C1]   bf16  1x1 conv weight (transposed)
    b2_ref  : [C_FEAT, 1]    f32
    wl_ref  : [S, E]         bf16  Linear weight (x @ w + b convention)
    bl_ref  : [1, E]         f32
    o_ref   : [B, C_FEAT, E] OUT_DTYPE
    """
    bn = o_ref.shape[0]         # batch
    s = wl_ref.shape[0]         # pooled spatial (Linear in_features)
    bs = bn * s                 # lanes per pool-parity chunk

    # conv1 (3x3 stride-2) for ALL parities and batch elements in ONE MXU dot.
    y1 = jnp.dot(w1_ref[...], taps_ref[...],
                 preferred_element_type=jnp.float32)            # [C1, 4*B*S]

    # 2x2/2 maxpool = elementwise max over the four parity lane-chunks, then the
    # shared per-channel bias + ReLU once (hoisted out of the parity blocks).
    pooled = jnp.maximum(jnp.maximum(y1[:, 0 * bs:1 * bs], y1[:, 1 * bs:2 * bs]),
                         jnp.maximum(y1[:, 2 * bs:3 * bs], y1[:, 3 * bs:4 * bs]))
    pooled = jnp.maximum(pooled + b1_ref[...], 0.0)             # [C1, B*S] f32

    # conv2 (1x1, surrogate for resnet layer1) + bias + ReLU, still batch-folded on lanes.
    y2 = jnp.dot(w2_ref[...], pooled.astype(jnp.bfloat16),
                 preferred_element_type=jnp.float32)            # [C_FEAT, B*S]
    y2 = jnp.maximum(y2 + b2_ref[...], 0.0)

    # Linear over the flattened spatial dim (PyTorch: features.flatten(2) @ W.T + b).
    # Contraction is per batch element (weight shared); B is a tiny static constant,
    # so this unrolls into B small MXU dots writing lane-dense [C_FEAT, E] tiles.
    wl = wl_ref[...]
    bl = bl_ref[...]
    for b in range(bn):
        xb = y2[:, b * s:(b + 1) * s].astype(jnp.bfloat16)      # [C_FEAT, S]
        feat = jnp.dot(xb, wl, preferred_element_type=jnp.float32) + bl
        o_ref[b] = feat.astype(o_ref.dtype)                     # [C_FEAT, E]


# ----------------------------- wrapper-side layout plumbing --------------------
def _conv1_taps(imgs):
    """conv1 tap operand, parity- and batch-folded onto the lane axis.

    imgs: [B, C_IN, H, W] NCHW f32
    returns [KTAPS, 4*B*S]: row = (ki*3+kj)*C_IN + cin,
    lane = (2*s+t)*(B*S) + b*S + ph*WP + pw for conv1 output (oh,ow)=(2ph+s, 2pw+t).
    Image-pad + strided-slice + transpose only; see TODO for the in-kernel 224 path.
    """
    Bn, Cc, Hh, Ww = imgs.shape
    assert Hh % 4 == 0 and Ww % 4 == 0
    Ho, Wo = Hh // 2, Ww // 2            # conv1 output spatial (stride 2, pad 1)
    hp, wp = Ho // 2, Wo // 2            # pooled spatial
    x = jnp.transpose(imgs, (0, 2, 3, 1))                        # NHWC
    xp = jnp.pad(x, ((0, 0), (1, 1), (1, 1), (0, 0)))            # conv pad = 1
    taps = [lax.slice(xp, (0, ki, kj, 0),
                      (Bn, ki + 2 * Ho, kj + 2 * Wo, Cc), (1, 2, 2, 1))
            for ki in range(3) for kj in range(3)]               # each [B, Ho, Wo, C]
    pat = jnp.stack(taps, axis=0)                                # [9, B, Ho, Wo, C]
    pat = pat.reshape(9, Bn, hp, 2, wp, 2, Cc)                   # (tap, b, ph, s, pw, t, c)
    pat = pat.transpose(0, 6, 3, 5, 1, 2, 4)                     # (tap, c, s, t, b, ph, pw)
    return pat.reshape(9 * Cc, 4 * Bn * hp * wp)                 # [KTAPS, 4*B*S]


def cnn_encoder3_forward(imgs, params):
    """imgs: [B, C_IN, H, W] (NCHW, like PyTorch). Returns features [B, C_FEAT, E]."""
    Bn = imgs.shape[0]
    taps = _conv1_taps(imgs).astype(jnp.bfloat16)                # [KTAPS, 4*B*S]

    w1 = params["w1t"].astype(jnp.bfloat16)
    w2 = params["w2t"].astype(jnp.bfloat16)
    wl = params["w_lin"].astype(jnp.bfloat16)
    b1 = params["b1"].reshape(C1, 1)
    b2 = params["b2"].reshape(C_FEAT, 1)
    bl = params["b_lin"].reshape(1, E)

    vmem = lambda: pl.BlockSpec(memory_space=pltpu.MemorySpace.VMEM)
    return pl.pallas_call(
        _encoder_kernel,
        out_shape=jax.ShapeDtypeStruct((Bn, C_FEAT, E), OUT_DTYPE),
        in_specs=[vmem() for _ in range(7)],   # whole (tiny) operands resident in VMEM
        out_specs=vmem(),
        # No grid: single invocation, batch folded onto the GEMM lane axis.
        # For large B, add a batch-block grid axis (CORE_PARALLEL on v7x).
    )(taps, w1, b1, w2, b2, wl, bl)


# ----------------------------- parameters --------------------------------------
def init_params(key):
    ks = jax.random.split(key, 6)
    scale = 0.05
    return {
        # conv1 3x3/2: w1t[c1, (ki*3+kj)*C_IN + cin] == torch_w1[c1, cin, ki, kj]
        "w1t": scale * jax.random.normal(ks[0], (C1, KTAPS), jnp.float32),
        "b1": scale * jax.random.normal(ks[1], (C1,), jnp.float32),
        # conv2 1x1: w2t[cf, c1] == torch_w2[cf, c1, 0, 0]
        "w2t": scale * jax.random.normal(ks[2], (C_FEAT, C1), jnp.float32),
        "b2": scale * jax.random.normal(ks[3], (C_FEAT,), jnp.float32),
        # nn.Linear(S, E): out = x @ w_lin + b_lin  (w_lin == linear.weight.T)
        "w_lin": scale * jax.random.normal(ks[4], (S, E), jnp.float32),
        "b_lin": scale * jax.random.normal(ks[5], (E,), jnp.float32),
    }


# ----------------------------- plain-JAX reference -----------------------------
def reference_forward(imgs, params):
    """Independent NHWC reference; bf16 GEMM operands mirror the kernel, output left f32."""
    f32 = jnp.float32
    bf = lambda a: a.astype(jnp.bfloat16).astype(f32)
    Bn, Cc, Hh, Ww = imgs.shape
    Ho, Wo = Hh // 2, Ww // 2
    x = jnp.transpose(imgs, (0, 2, 3, 1))
    xp = bf(jnp.pad(x, ((0, 0), (1, 1), (1, 1), (0, 0))))
    taps = [lax.slice(xp, (0, ki, kj, 0), (Bn, ki + 2 * Ho, kj + 2 * Wo, Cc),
                      (1, 2, 2, 1))
            for ki in range(3) for kj in range(3)]
    pat = jnp.concatenate(taps, axis=-1)                          # [B,Ho,Wo,KTAPS]
    y1 = jnp.einsum("bhwk,ck->bhwc", pat, bf(params["w1t"]),
                    precision=lax.Precision.HIGHEST) + params["b1"]
    y1 = jnp.maximum(y1, 0.0)
    pool = y1.reshape(Bn, Ho // 2, 2, Wo // 2, 2, C1).max(axis=(2, 4))
    y2 = jnp.einsum("bhwc,fc->bhwf", bf(pool), bf(params["w2t"]),
                    precision=lax.Precision.HIGHEST) + params["b2"]
    y2 = jnp.maximum(y2, 0.0)
    feat = jnp.transpose(y2, (0, 3, 1, 2)).reshape(Bn, C_FEAT, S)  # .flatten(2)
    return jnp.einsum("bfs,se->bfe", bf(feat), bf(params["w_lin"]),
                      precision=lax.Precision.HIGHEST) + params["b_lin"]


# ----------------------------- main ---------------------------------------------
if __name__ == "__main__":
    key = jax.random.PRNGKey(0)
    k_img, k_par = jax.random.split(key)
    imgs = jax.random.normal(k_img, (B, C_IN, H, W), jnp.float32)
    params = init_params(k_par)

    features = jax.jit(cnn_encoder3_forward)(imgs, params)
    jax.block_until_ready(features)

    assert features.shape == (B, C_FEAT, E), features.shape
    assert features.dtype == OUT_DTYPE, features.dtype
    feat_f32 = features.astype(jnp.float32)
    assert bool(jnp.all(jnp.isfinite(feat_f32)))

    ref = reference_forward(imgs, params)
    max_err = jnp.max(jnp.abs(feat_f32 - ref))
    # f32 reference vs kernel (bf16 GEMM operands + one final bf16 store rounding)
    assert bool(max_err < 3e-3), f"max abs error vs reference: {max_err}"

    print("KERNEL_OK")
</pallas_src>

<mosaic_0001>
module attributes {stable_mosaic.version = 11 : i64} {
  func.func @_encoder_kernel(%arg0: memref<27x128xbf16, #tpu.memory_space<vmem>>, %arg1: memref<64x27xbf16, #tpu.memory_space<vmem>>, %arg2: memref<64x1xf32, #tpu.memory_space<vmem>>, %arg3: memref<128x64xbf16, #tpu.memory_space<vmem>>, %arg4: memref<128x1xf32, #tpu.memory_space<vmem>>, %arg5: memref<16x128xbf16, #tpu.memory_space<vmem>>, %arg6: memref<1x128xf32, #tpu.memory_space<vmem>>, %arg7: memref<2x128x128xbf16, #tpu.memory_space<vmem>>) attributes {dimension_semantics = [], scalar_prefetch = 0 : i64, scratch_operands = 0 : i64, tpu.core_type = #tpu.core_type<tc>} {
    %c0 = arith.constant 0 : index
    %c0_0 = arith.constant 0 : index
    %0 = vector.load %arg1[%c0, %c0_0] : memref<64x27xbf16, #tpu.memory_space<vmem>>, vector<64x27xbf16>
    %c0_1 = arith.constant 0 : index
    %c0_2 = arith.constant 0 : index
    %1 = vector.load %arg0[%c0_1, %c0_2] : memref<27x128xbf16, #tpu.memory_space<vmem>>, vector<27x128xbf16>
    %cst = arith.constant dense<0.000000e+00> : vector<64x128xf32>
    %2 = tpu.matmul %0, %1, %cst {dimension_numbers = #tpu.dot_dimension_numbers<[1], [0], [0], [1], [0, 0, 1, 1], [], []>} : vector<64x27xbf16>, vector<27x128xbf16>, vector<64x128xf32> -> vector<64x128xf32>
    %3 = vector.extract_strided_slice %2 {offsets = [0, 0], sizes = [64, 32], strides = [1, 1]} : vector<64x128xf32> to vector<64x32xf32>
    %4 = vector.extract_strided_slice %2 {offsets = [0, 32], sizes = [64, 32], strides = [1, 1]} : vector<64x128xf32> to vector<64x32xf32>
    %5 = arith.maximumf %3, %4 : vector<64x32xf32>
    %6 = vector.extract_strided_slice %2 {offsets = [0, 64], sizes = [64, 32], strides = [1, 1]} : vector<64x128xf32> to vector<64x32xf32>
    %7 = vector.extract_strided_slice %2 {offsets = [0, 96], sizes = [64, 32], strides = [1, 1]} : vector<64x128xf32> to vector<64x32xf32>
    %8 = arith.maximumf %6, %7 : vector<64x32xf32>
    %9 = arith.maximumf %5, %8 : vector<64x32xf32>
    %c0_3 = arith.constant 0 : index
    %c0_4 = arith.constant 0 : index
    %10 = vector.load %arg2[%c0_3, %c0_4] : memref<64x1xf32, #tpu.memory_space<vmem>>, vector<64x1xf32>
    %11 = vector.broadcast %10 : vector<64x1xf32> to vector<64x32xf32>
    %12 = arith.addf %9, %11 : vector<64x32xf32>
    %cst_5 = arith.constant 0.000000e+00 : f32
    %13 = vector.broadcast %cst_5 : f32 to vector<64x32xf32>
    %14 = arith.maximumf %12, %13 : vector<64x32xf32>
    %c0_6 = arith.constant 0 : index
    %c0_7 = arith.constant 0 : index
    %15 = vector.load %arg3[%c0_6, %c0_7] : memref<128x64xbf16, #tpu.memory_space<vmem>>, vector<128x64xbf16>
    %16 = arith.truncf %14 : vector<64x32xf32> to vector<64x32xbf16>
    %cst_8 = arith.constant dense<0.000000e+00> : vector<128x32xf32>
    %17 = tpu.matmul %15, %16, %cst_8 {dimension_numbers = #tpu.dot_dimension_numbers<[1], [0], [0], [1], [0, 0, 1, 1], [], []>} : vector<128x64xbf16>, vector<64x32xbf16>, vector<128x32xf32> -> vector<128x32xf32>
    %c0_9 = arith.constant 0 : index
    %c0_10 = arith.constant 0 : index
    %18 = vector.load %arg4[%c0_9, %c0_10] : memref<128x1xf32, #tpu.memory_space<vmem>>, vector<128x1xf32>
    %19 = vector.broadcast %18 : vector<128x1xf32> to vector<128x32xf32>
    %20 = arith.addf %17, %19 : vector<128x32xf32>
    %cst_11 = arith.constant 0.000000e+00 : f32
    %21 = vector.broadcast %cst_11 : f32 to vector<128x32xf32>
    %22 = arith.maximumf %20, %21 : vector<128x32xf32>
    %c0_12 = arith.constant 0 : index
    %c0_13 = arith.constant 0 : index
    %23 = vector.load %arg5[%c0_12, %c0_13] : memref<16x128xbf16, #tpu.memory_space<vmem>>, vector<16x128xbf16>
    %c0_14 = arith.constant 0 : index
    %c0_15 = arith.constant 0 : index
    %24 = vector.load %arg6[%c0_14, %c0_15] : memref<1x128xf32, #tpu.memory_space<vmem>>, vector<1x128xf32>
    %25 = vector.extract_strided_slice %22 {offsets = [0, 0], sizes = [128, 16], strides = [1, 1]} : vector<128x32xf32> to vector<128x16xf32>
    %26 = arith.truncf %25 : vector<128x16xf32> to vector<128x16xbf16>
    %cst_16 = arith.constant dense<0.000000e+00> : vector<128x128xf32>
    %27 = tpu.matmul %26, %23, %cst_16 {dimension_numbers = #tpu.dot_dimension_numbers<[1], [0], [0], [1], [0, 0, 1, 1], [], []>} : vector<128x16xbf16>, vector<16x128xbf16>, vector<128x128xf32> -> vector<128x128xf32>
    %28 = vector.broadcast %24 : vector<1x128xf32> to vector<128x128xf32>
    %29 = arith.addf %27, %28 : vector<128x128xf32>
    %30 = arith.truncf %29 : vector<128x128xf32> to vector<128x128xbf16>
    %c0_17 = arith.constant 0 : index
    %c0_18 = arith.constant 0 : index
    %c0_19 = arith.constant 0 : index
    %31 = vector.load %arg7[%c0_17, %c0_18, %c0_19] : memref<2x128x128xbf16, #tpu.memory_space<vmem>>, vector<1x128x128xbf16>
    %32 = vector.shape_cast %31 : vector<1x128x128xbf16> to vector<128x128xbf16>
    %33 = vector.shape_cast %30 : vector<128x128xbf16> to vector<1x128x128xbf16>
    tpu.vector_store %arg7[%c0_17, %c0_18, %c0_19], %33 {strides = array<i32>} : memref<2x128x128xbf16, #tpu.memory_space<vmem>>, vector<1x128x128xbf16>,
    %34 = vector.extract_strided_slice %22 {offsets = [0, 16], sizes = [128, 16], strides = [1, 1]} : vector<128x32xf32> to vector<128x16xf32>
    %35 = arith.truncf %34 : vector<128x16xf32> to vector<128x16xbf16>
    %cst_20 = arith.constant dense<0.000000e+00> : vector<128x128xf32>
    %36 = tpu.matmul %35, %23, %cst_20 {dimension_numbers = #tpu.dot_dimension_numbers<[1], [0], [0], [1], [0, 0, 1, 1], [], []>} : vector<128x16xbf16>, vector<16x128xbf16>, vector<128x128xf32> -> vector<128x128xf32>
    %37 = vector.broadcast %24 : vector<1x128xf32> to vector<128x128xf32>
    %38 = arith.addf %36, %37 : vector<128x128xf32>
    %39 = arith.truncf %38 : vector<128x128xf32> to vector<128x128xbf16>
    %c1 = arith.constant 1 : index
    %c0_21 = arith.constant 0 : index
    %c0_22 = arith.constant 0 : index
    %40 = vector.load %arg7[%c1, %c0_21, %c0_22] : memref<2x128x128xbf16, #tpu.memory_space<vmem>>, vector<1x128x128xbf16>
    %41 = vector.shape_cast %40 : vector<1x128x128xbf16> to vector<128x128xbf16>
    %42 = vector.shape_cast %39 : vector<128x128xbf16> to vector<1x128x128xbf16>
    tpu.vector_store %arg7[%c1, %c0_21, %c0_22], %42 {strides = array<i32>} : memref<2x128x128xbf16, #tpu.memory_space<vmem>>, vector<1x128x128xbf16>,
    return
  }
}

</mosaic_0001>

<llo_original>
// kernel: cnn_encoder3_forward.1
$region0: #{cnn_encoder3_forward.1}
  #allocation0 [shape = 'u32[]', space=smem, size = 0x4, offset = 0x4, fixed_abs, tag = 'smem constant byte address 0x4 - core index']
  #allocation1 [shape = 'u32[72,128]{1,0:T(1,128)}', space=vmem, size = 0x9000, scoped, tag = 'internal scratch']
  %s0 = inlined_call_operand.vmem [shape: bf16[27,128], index: 0, kind: input, shape index: {}]
  %s1 = inlined_call_operand.vmem [shape: bf16[64,27], index: 1, kind: input, shape index: {}]
  %s2 = inlined_call_operand.vmem [shape: f32[64,1], index: 2, kind: input, shape index: {}]
  %s3 = inlined_call_operand.vmem [shape: bf16[128,64], index: 3, kind: input, shape index: {}]
  %s4 = inlined_call_operand.vmem [shape: f32[128,1], index: 4, kind: input, shape index: {}]
  %s5 = inlined_call_operand.vmem [shape: bf16[16,128], index: 5, kind: input, shape index: {}]
  %s6 = inlined_call_operand.vmem [shape: f32[1,128], index: 6, kind: input, shape index: {}]
  %s7 = inlined_call_operand.hbm [shape: bf16[2,128,128], index: 7, kind: output, shape index: {}]
  %s8 = sld [smem:[#allocation0]]
  $region38: #{cnn_encoder3_forward.1} parent=0
    _
  %s10 = ssub.s32 1, %s8
  %s11 = scalar_select 0, %s10, %s8
  $region1: #{cnn_encoder3_forward.1} parent=0
    #allocation2 [shape = 'u8[65536]{0}', space=vmem, size = 0x10000, scoped, tag = 'output window, operand 0, single buffered']
    #allocation3 [shape = 's32[1]{0}', space=sflag, size = 0x4, scoped, tag = 'scoped memory for cnn_encoder3_forward.1']
    %12 = vsyncpa [#allocation3], 0
    // Predicated region
    $region2: #{cnn_encoder3_forward.1} parent=1 // pred_check
      _
    $region3: #{cnn_encoder3_forward.1} parent=1 // pred_check_branch
      %14 = sbr.rel (0) target = $region5
    $region4: #{cnn_encoder3_forward.1} parent=1 // pred_region
      _
    $region5: #{cnn_encoder3_forward.1} parent=1 // pred_fallthru
      _
    // Predicated region
    $region6: #{cnn_encoder3_forward.1} parent=1 // pred_check
      _
    $region7: #{cnn_encoder3_forward.1} parent=1 // pred_check_branch
      %16 = sbr.rel (0) target = $region9
    $region8: #{cnn_encoder3_forward.1} parent=1 // pred_region
      _
    $region9: #{cnn_encoder3_forward.1} parent=1 // pred_fallthru
      _
    // Predicated region
    $region10: #{cnn_encoder3_forward.1} parent=1 // pred_check
      _
    $region11: #{cnn_encoder3_forward.1} parent=1 // pred_check_branch
      %18 = sbr.rel (0) target = $region13
    $region12: #{cnn_encoder3_forward.1} parent=1 // pred_region
      _
    $region13: #{cnn_encoder3_forward.1} parent=1 // pred_fallthru
      _
    // Predicated region
    $region14: #{cnn_encoder3_forward.1} parent=1 // pred_check
      _
    $region15: #{cnn_encoder3_forward.1} parent=1 // pred_check_branch
      %20 = sbr.rel (0) target = $region17
    $region16: #{cnn_encoder3_forward.1} parent=1 // pred_region
      _
    $region17: #{cnn_encoder3_forward.1} parent=1 // pred_fallthru
      _
    // Predicated region
    $region18: #{cnn_encoder3_forward.1} parent=1 // pred_check
      _
    $region19: #{cnn_encoder3_forward.1} parent=1 // pred_check_branch
      %22 = sbr.rel (0) target = $region21
    $region20: #{cnn_encoder3_forward.1} parent=1 // pred_region
      _
    $region21: #{cnn_encoder3_forward.1} parent=1 // pred_fallthru
      _
    // Predicated region
    $region22: #{cnn_encoder3_forward.1} parent=1 // pred_check
      _
    $region23: #{cnn_encoder3_forward.1} parent=1 // pred_check_branch
      %24 = sbr.rel (0) target = $region25
    $region24: #{cnn_encoder3_forward.1} parent=1 // pred_region
      _
    $region25: #{cnn_encoder3_forward.1} parent=1 // pred_fallthru
      _
    // Predicated region
    $region26: #{cnn_encoder3_forward.1} parent=1 // pred_check
      _
    $region27: #{cnn_encoder3_forward.1} parent=1 // pred_check_branch
      %26 = sbr.rel (0) target = $region29
    $region28: #{cnn_encoder3_forward.1} parent=1 // pred_region
      _
    $region29: #{cnn_encoder3_forward.1} parent=1 // pred_fallthru
      _
    %v28 = vld [vmem:[%s1] sm:$0xf]
    %v29 = vld [vmem:[%s1 + $0x4] sm:$0xf]
    %v30 = vld [vmem:[%s1 + $0x8] sm:$0xf]
    %v31 = vld [vmem:[%s1 + $0xc] sm:$0xf]
    %v32 = vld [vmem:[%s1 + $0x10] sm:$0xf]
    %v33 = vld [vmem:[%s1 + $0x14] sm:$0xf]
    %v34 = vld [vmem:[%s1 + $0x18] sm:$0xf]
    %v35 = vld [vmem:[%s1 + $0x1c] sm:$0xf]
    %v36 = vld [vmem:[%s0] sm:$0xf]
    %v37 = vld [vmem:[%s0 + $0x4] sm:$0xf]
    %v38 = vld [vmem:[%s0 + $0x8] sm:$0xf]
    %v39 = vld [vmem:[%s0 + $0xc] sm:$0x3]
    %v48 = vunpack.c.l.b16 %v28
    %v49 = vunpack.c.l.b16 %v29
    %v50 = vunpack.c.l.b16 %v30
    %v51 = vunpack.c.l.b16 %v31
    %v52 = vunpack.c.l.b16 %v32
    %v53 = vunpack.c.l.b16 %v33
    %v54 = vunpack.c.l.b16 %v34
    %v55 = vunpack.c.l.b16 %v35
    %v56 = vpack.c.b16 %v49, %v48
    %v57 = vpack.c.b16 %v51, %v50
    %v58 = vpack.c.b16 %v53, %v52
    %v59 = vpack.c.b16 %v55, %v54
    %v64 = vunpack.c.l.b16 %v36
    %v65 = vunpack.c.l.b16 %v37
    %v66 = vunpack.c.l.b16 %v38
    %v67 = vunpack.c.l.b16 %v39
    %v68 = vpack.c.b16 %v65, %v64
    %v69 = vpack.c.b16 %v67, %v66
    %vm71 = vcmask 220160
    %v73 = vsel %vm71, %v56, 0
    %v76 = vsel %vm71, %v57, 0
    %v79 = vsel %vm71, %v58, 0
    %v82 = vsel %vm71, %v59, 0
    %vm84 = vcmask 1044480
    %vm85 = vcmask 1045504
    %v86 = vsel %vm84, 4294967295, 65535
    %v87 = vsel %vm85, %v86, 0
    %v89 = vand.u32 %v69, %v87
    %91 = vmatpush.bf16.msra.mxu0 0
    %92 = vmatpush.bf16.msra.mxu0 0
    %93 = vmatpush.bf16.msra.mxu0 0
    %94 = vmatpush.bf16.msra.mxu0 0
    %95 = vmatpush.bf16.msra.mxu0 0
    %96 = vmatpush.bf16.msra.mxu0 0
    %97 = vmatpush.bf16.msra.mxu0 %v89
    %98 = vmatpush.bf16.msra.mxu0 %v68
    %99 = vmatmul.bf16.gmra.mxu0 %v73
    %v100 = vpop.f32.mrf.mxu0
    %v101 = vadd.f32 0.0, %v100
    %v102 = vpop.f32.mrf.mxu0
    %v103 = vadd.f32 0.0, %v102
    %104 = vmatmul.bf16.gmra.mxu0 %v76
    %v105 = vpop.f32.mrf.mxu0
    %v106 = vadd.f32 0.0, %v105
    %v107 = vpop.f32.mrf.mxu0
    %v108 = vadd.f32 0.0, %v107
    %109 = vmatmul.bf16.gmra.mxu0 %v79
    %v110 = vpop.f32.mrf.mxu0
    %v111 = vadd.f32 0.0, %v110
    %v112 = vpop.f32.mrf.mxu0
    %v113 = vadd.f32 0.0, %v112
    %114 = vmatmul.bf16.gmra.mxu0 %v82
    %v115 = vpop.f32.mrf.mxu0
    %v116 = vadd.f32 0.0, %v115
    %v117 = vpop.f32.mrf.mxu0
    %v118 = vadd.f32 0.0, %v117
    %119 = vdwg.mxu0
    %128 = vrot.lane.b32.xlu0 %v101, 96
    %v129 = vpop.permute.xlu0 %128
    %130 = vrot.lane.b32.xlu0 %v103, 96
    %v131 = vpop.permute.xlu0 %130
    %132 = vrot.lane.b32.xlu0 %v106, 96
    %v133 = vpop.permute.xlu0 %132
    %134 = vrot.lane.b32.xlu0 %v108, 96
    %v135 = vpop.permute.xlu0 %134
    %136 = vrot.lane.b32.xlu0 %v111, 96
    %v137 = vpop.permute.xlu0 %136
    %138 = vrot.lane.b32.xlu0 %v113, 96
    %v139 = vpop.permute.xlu0 %138
    %140 = vrot.lane.b32.xlu0 %v116, 96
    %v141 = vpop.permute.xlu0 %140
    %142 = vrot.lane.b32.xlu0 %v118, 96
    %v143 = vpop.permute.xlu0 %142
    %v152 = vmax.f32 %v101, %v129
    %v153 = vmax.f32 %v103, %v131
    %v154 = vmax.f32 %v106, %v133
    %v155 = vmax.f32 %v108, %v135
    %v156 = vmax.f32 %v111, %v137
    %v157 = vmax.f32 %v113, %v139
    %v158 = vmax.f32 %v116, %v141
    %v159 = vmax.f32 %v118, %v143
    %168 = vrot.lane.b32.xlu0 %v152, 64
    %v169 = vpop.permute.xlu0 %168
    %170 = vrot.lane.b32.xlu0 %v153, 64
    %v171 = vpop.permute.xlu0 %170
    %172 = vrot.lane.b32.xlu0 %v154, 64
    %v173 = vpop.permute.xlu0 %172
    %174 = vrot.lane.b32.xlu0 %v155, 64
    %v175 = vpop.permute.xlu0 %174
    %176 = vrot.lane.b32.xlu0 %v156, 64
    %v177 = vpop.permute.xlu0 %176
    %178 = vrot.lane.b32.xlu0 %v157, 64
    %v179 = vpop.permute.xlu0 %178
    %180 = vrot.lane.b32.xlu0 %v158, 64
    %v181 = vpop.permute.xlu0 %180
    %182 = vrot.lane.b32.xlu0 %v159, 64
    %v183 = vpop.permute.xlu0 %182
    %v192 = vmax.f32 %v152, %v169
    %v193 = vmax.f32 %v153, %v171
    %v194 = vmax.f32 %v154, %v173
    %v195 = vmax.f32 %v155, %v175
    %v196 = vmax.f32 %v156, %v177
    %v197 = vmax.f32 %v157, %v179
    %v198 = vmax.f32 %v158, %v181
    %v199 = vmax.f32 %v159, %v183
    %v200 = vld [vmem:[%s2] sm:$0xff]
    %v201 = vld [vmem:[%s2 + $0x8] sm:$0xff]
    %v202 = vld [vmem:[%s2 + $0x10] sm:$0xff]
    %v203 = vld [vmem:[%s2 + $0x18] sm:$0xff]
    %v204 = vld [vmem:[%s2 + $0x20] sm:$0xff]
    %v205 = vld [vmem:[%s2 + $0x28] sm:$0xff]
    %v206 = vld [vmem:[%s2 + $0x30] sm:$0xff]
    %v207 = vld [vmem:[%s2 + $0x38] sm:$0xff]
    %209 = vset.pattern.permute.xlu0 0
    %210 = vperm.xlu0 %209, %v200
    %v211 = vpop.permute.xlu0 %210
    %214 = vset.pattern.permute.xlu0 0
    %215 = vperm.xlu0 %214, %v201
    %v216 = vpop.permute.xlu0 %215
    %219 = vset.pattern.permute.xlu0 0
    %220 = vperm.xlu0 %219, %v202
    %v221 = vpop.permute.xlu0 %220
    %224 = vset.pattern.permute.xlu0 0
    %225 = vperm.xlu0 %224, %v203
    %v226 = vpop.permute.xlu0 %225
    %229 = vset.pattern.permute.xlu0 0
    %230 = vperm.xlu0 %229, %v204
    %v231 = vpop.permute.xlu0 %230
    %234 = vset.pattern.permute.xlu0 0
    %235 = vperm.xlu0 %234, %v205
    %v236 = vpop.permute.xlu0 %235
    %239 = vset.pattern.permute.xlu0 0
    %240 = vperm.xlu0 %239, %v206
    %v241 = vpop.permute.xlu0 %240
    %244 = vset.pattern.permute.xlu0 0
    %245 = vperm.xlu0 %244, %v207
    %v246 = vpop.permute.xlu0 %245
    %v248 = vadd.f32 %v192, %v211
    %v249 = vadd.f32 %v193, %v216
    %v250 = vadd.f32 %v194, %v221
    %v251 = vadd.f32 %v195, %v226
    %v252 = vadd.f32 %v196, %v231
    %v253 = vadd.f32 %v197, %v236
    %v254 = vadd.f32 %v198, %v241
    %v255 = vadd.f32 %v199, %v246
    %v256 = vmax.f32 %v248, 0.0
    %v257 = vmax.f32 %v249, 0.0
    %v258 = vmax.f32 %v250, 0.0
    %v259 = vmax.f32 %v251, 0.0
    %v260 = vmax.f32 %v252, 0.0
    %v261 = vmax.f32 %v253, 0.0
    %v262 = vmax.f32 %v254, 0.0
    %v263 = vmax.f32 %v255, 0.0
    %v264 = vld [vmem:[%s3] sm:$0xf]
    %v265 = vld [vmem:[%s3 + $0x4] sm:$0xf]
    %v266 = vld [vmem:[%s3 + $0x8] sm:$0xf]
    %v267 = vld [vmem:[%s3 + $0xc] sm:$0xf]
    %v268 = vld [vmem:[%s3 + $0x10] sm:$0xf]
    %v269 = vld [vmem:[%s3 + $0x14] sm:$0xf]
    %v270 = vld [vmem:[%s3 + $0x18] sm:$0xf]
    %v271 = vld [vmem:[%s3 + $0x1c] sm:$0xf]
    %v272 = vld [vmem:[%s3 + $0x20] sm:$0xf]
    %v273 = vld [vmem:[%s3 + $0x24] sm:$0xf]
    %v274 = vld [vmem:[%s3 + $0x28] sm:$0xf]
    %v275 = vld [vmem:[%s3 + $0x2c] sm:$0xf]
    %v276 = vld [vmem:[%s3 + $0x30] sm:$0xf]
    %v277 = vld [vmem:[%s3 + $0x34] sm:$0xf]
    %v278 = vld [vmem:[%s3 + $0x38] sm:$0xf]
    %v279 = vld [vmem:[%s3 + $0x3c] sm:$0xf]
    %v280 = vpack.c.bf16 %v257, %v256
    %v281 = vpack.c.bf16 %v259, %v258
    %v282 = vpack.c.bf16 %v261, %v260
    %v283 = vpack.c.bf16 %v263, %v262
    %v284 = vld [vmem:[%s4] sm:$0xff]
    %v285 = vld [vmem:[%s4 + $0x8] sm:$0xff]
    %v286 = vld [vmem:[%s4 + $0x10] sm:$0xff]
    %v287 = vld [vmem:[%s4 + $0x18] sm:$0xff]
    %v288 = vld [vmem:[%s4 + $0x20] sm:$0xff]
    %v289 = vld [vmem:[%s4 + $0x28] sm:$0xff]
    %v290 = vld [vmem:[%s4 + $0x30] sm:$0xff]
    %v291 = vld [vmem:[%s4 + $0x38] sm:$0xff]
    %v292 = vld [vmem:[%s4 + $0x40] sm:$0xff]
    %v293 = vld [vmem:[%s4 + $0x48] sm:$0xff]
    %v294 = vld [vmem:[%s4 + $0x50] sm:$0xff]
    %v295 = vld [vmem:[%s4 + $0x58] sm:$0xff]
    %v296 = vld [vmem:[%s4 + $0x60] sm:$0xff]
    %v297 = vld [vmem:[%s4 + $0x68] sm:$0xff]
    %v298 = vld [vmem:[%s4 + $0x70] sm:$0xff]
    %v299 = vld [vmem:[%s4 + $0x78] sm:$0xff]
    %301 = vset.pattern.permute.xlu0 0
    %302 = vperm.xlu0 %301, %v284
    %v303 = vpop.permute.xlu0 %302
    %306 = vset.pattern.permute.xlu0 0
    %307 = vperm.xlu0 %306, %v285
    %v308 = vpop.permute.xlu0 %307
    %311 = vset.pattern.permute.xlu0 0
    %312 = vperm.xlu0 %311, %v286
    %v313 = vpop.permute.xlu0 %312
    %316 = vset.pattern.permute.xlu0 0
    %317 = vperm.xlu0 %316, %v287
    %v318 = vpop.permute.xlu0 %317
    %321 = vset.pattern.permute.xlu0 0
    %322 = vperm.xlu0 %321, %v288
    %v323 = vpop.permute.xlu0 %322
    %326 = vset.pattern.permute.xlu0 0
    %327 = vperm.xlu0 %326, %v289
    %v328 = vpop.permute.xlu0 %327
    %331 = vset.pattern.permute.xlu0 0
    %332 = vperm.xlu0 %331, %v290
    %v333 = vpop.permute.xlu0 %332
    %336 = vset.pattern.permute.xlu0 0
    %337 = vperm.xlu0 %336, %v291
    %v338 = vpop.permute.xlu0 %337
    %341 = vset.pattern.permute.xlu0 0
    %342 = vperm.xlu0 %341, %v292
    %v343 = vpop.permute.xlu0 %342
    %346 = vset.pattern.permute.xlu0 0
    %347 = vperm.xlu0 %346, %v293
    %v348 = vpop.permute.xlu0 %347
    %351 = vset.pattern.permute.xlu0 0
    %352 = vperm.xlu0 %351, %v294
    %v353 = vpop.permute.xlu0 %352
    %356 = vset.pattern.permute.xlu0 0
    %357 = vperm.xlu0 %356, %v295
    %v358 = vpop.permute.xlu0 %357
    %361 = vset.pattern.permute.xlu0 0
    %362 = vperm.xlu0 %361, %v296
    %v363 = vpop.permute.xlu0 %362
    %366 = vset.pattern.permute.xlu0 0
    %367 = vperm.xlu0 %366, %v297
    %v368 = vpop.permute.xlu0 %367
    %371 = vset.pattern.permute.xlu0 0
    %372 = vperm.xlu0 %371, %v298
    %v373 = vpop.permute.xlu0 %372
    %376 = vset.pattern.permute.xlu0 0
    %377 = vperm.xlu0 %376, %v299
    %v378 = vpop.permute.xlu0 %377
    %v396 = vunpack.c.l.b16 %v264
    %v397 = vunpack.c.l.b16 %v265
    %v398 = vunpack.c.l.b16 %v266
    %v399 = vunpack.c.l.b16 %v267
    %v400 = vunpack.c.l.b16 %v268
    %v401 = vunpack.c.l.b16 %v269
    %v402 = vunpack.c.l.b16 %v270
    %v403 = vunpack.c.l.b16 %v271
    %v404 = vunpack.c.l.b16 %v272
    %v405 = vunpack.c.l.b16 %v273
    %v406 = vunpack.c.l.b16 %v274
    %v407 = vunpack.c.l.b16 %v275
    %v408 = vunpack.c.l.b16 %v276
    %v409 = vunpack.c.l.b16 %v277
    %v410 = vunpack.c.l.b16 %v278
    %v411 = vunpack.c.l.b16 %v279
    %v412 = vpack.c.b16 %v397, %v396
    %v413 = vpack.c.b16 %v399, %v398
    %v414 = vpack.c.b16 %v401, %v400
    %v415 = vpack.c.b16 %v403, %v402
    %v416 = vpack.c.b16 %v405, %v404
    %v417 = vpack.c.b16 %v407, %v406
    %v418 = vpack.c.b16 %v409, %v408
    %v419 = vpack.c.b16 %v411, %v410
    %vm420 = vcmask 523264
    %v422 = vsel %vm420, %v412, 0
    %v425 = vsel %vm420, %v413, 0
    %v428 = vsel %vm420, %v414, 0
    %v431 = vsel %vm420, %v415, 0
    %v434 = vsel %vm420, %v416, 0
    %v437 = vsel %vm420, %v417, 0
    %v440 = vsel %vm420, %v418, 0
    %v443 = vsel %vm420, %v419, 0
    %445 = vmatpush.bf16.msra.mxu0 0
    %446 = vmatpush.bf16.msra.mxu0 0
    %447 = vmatpush.bf16.msra.mxu0 0
    %448 = vmatpush.bf16.msra.mxu0 0
    %449 = vmatpush.bf16.msra.mxu0 %v283
    %450 = vmatpush.bf16.msra.mxu0 %v282
    %451 = vmatpush.bf16.msra.mxu0 %v281
    %452 = vmatpush.bf16.msra.mxu0 %v280
    %453 = vmatmul.bf16.gmra.mxu0 %v422
    %v454 = vpop.f32.mrf.mxu0
    %v455 = vadd.f32 %v303, %v454
    %v456 = vpop.f32.mrf.mxu0
    %v457 = vadd.f32 %v308, %v456
    %458 = vmatmul.bf16.gmra.mxu0 %v425
    %v459 = vpop.f32.mrf.mxu0
    %v460 = vadd.f32 %v313, %v459
    %v461 = vpop.f32.mrf.mxu0
    %v462 = vadd.f32 %v318, %v461
    %463 = vmatmul.bf16.gmra.mxu0 %v428
    %v464 = vpop.f32.mrf.mxu0
    %v465 = vadd.f32 %v323, %v464
    %v466 = vpop.f32.mrf.mxu0
    %v467 = vadd.f32 %v328, %v466
    %468 = vmatmul.bf16.gmra.mxu0 %v431
    %v469 = vpop.f32.mrf.mxu0
    %v470 = vadd.f32 %v333, %v469
    %v471 = vpop.f32.mrf.mxu0
    %v472 = vadd.f32 %v338, %v471
    %473 = vmatmul.bf16.gmra.mxu0 %v434
    %v474 = vpop.f32.mrf.mxu0
    %v475 = vadd.f32 %v343, %v474
    %v476 = vpop.f32.mrf.mxu0
    %v477 = vadd.f32 %v348, %v476
    %478 = vmatmul.bf16.gmra.mxu0 %v437
    %v479 = vpop.f32.mrf.mxu0
    %v480 = vadd.f32 %v353, %v479
    %v481 = vpop.f32.mrf.mxu0
    %v482 = vadd.f32 %v358, %v481
    %483 = vmatmul.bf16.gmra.mxu0 %v440
    %v484 = vpop.f32.mrf.mxu0
    %v485 = vadd.f32 %v363, %v484
    %v486 = vpop.f32.mrf.mxu0
    %v487 = vadd.f32 %v368, %v486
    %488 = vmatmul.bf16.gmra.mxu0 %v443
    %v489 = vpop.f32.mrf.mxu0
    %v490 = vadd.f32 %v373, %v489
    %v491 = vpop.f32.mrf.mxu0
    %v492 = vadd.f32 %v378, %v491
    %493 = vdwg.mxu0
    %v494 = vmax.f32 %v455, 0.0
    %v495 = vmax.f32 %v457, 0.0
    %v496 = vmax.f32 %v460, 0.0
    %v497 = vmax.f32 %v462, 0.0
    %v498 = vmax.f32 %v465, 0.0
    %v499 = vmax.f32 %v467, 0.0
    %v500 = vmax.f32 %v470, 0.0
    %v501 = vmax.f32 %v472, 0.0
    %v502 = vmax.f32 %v475, 0.0
    %v503 = vmax.f32 %v477, 0.0
    %v504 = vmax.f32 %v480, 0.0
    %v505 = vmax.f32 %v482, 0.0
    %v506 = vmax.f32 %v485, 0.0
    %v507 = vmax.f32 %v487, 0.0
    %v508 = vmax.f32 %v490, 0.0
    %v509 = vmax.f32 %v492, 0.0
    %v510 = vld [vmem:[%s5] sm:$0xf]
    %v511 = vld [vmem:[%s5 + $0x4] sm:$0xf]
    %v512 = vld [vmem:[%s6] sm:$0x1]
    %v513 = vpack.c.bf16 %v495, %v494
    %v514 = vpack.c.bf16 %v497, %v496
    %v515 = vpack.c.bf16 %v499, %v498
    %v516 = vpack.c.bf16 %v501, %v500
    %v517 = vpack.c.bf16 %v503, %v502
    %v518 = vpack.c.bf16 %v505, %v504
    %v519 = vpack.c.bf16 %v507, %v506
    %v520 = vpack.c.bf16 %v509, %v508
    %v522 = vperm.slane %v512, 0
    %v526 = vunpack.c.l.b16 %v510
    %v527 = vunpack.c.l.b16 %v511
    %v528 = vpack.c.b16 %v527, %v526
    %vm530 = vcmask 130048
    %v532 = vsel %vm530, %v513, 0
    %v535 = vsel %vm530, %v514, 0
    %v538 = vsel %vm530, %v515, 0
    %v541 = vsel %vm530, %v516, 0
    %v544 = vsel %vm530, %v517, 0
    %v547 = vsel %vm530, %v518, 0
    %v550 = vsel %vm530, %v519, 0
    %v553 = vsel %vm530, %v520, 0
    %555 = vmatpush.bf16.msra.mxu0 0
    %556 = vmatpush.bf16.msra.mxu0 0
    %557 = vmatpush.bf16.msra.mxu0 0
    %558 = vmatpush.bf16.msra.mxu0 0
    %559 = vmatpush.bf16.msra.mxu0 0
    %560 = vmatpush.bf16.msra.mxu0 0
    %561 = vmatpush.bf16.msra.mxu0 0
    %562 = vmatpush.bf16.msra.mxu0 %v528
    %563 = vmatmul.bf16.gmra.mxu0 %v532
    %v564 = vpop.f32.mrf.mxu0
    %v565 = vadd.f32 %v522, %v564
    %v566 = vpop.f32.mrf.mxu0
    %v567 = vadd.f32 %v522, %v566
    %568 = vmatmul.bf16.gmra.mxu0 %v535
    %v569 = vpop.f32.mrf.mxu0
    %v570 = vadd.f32 %v522, %v569
    %v571 = vpop.f32.mrf.mxu0
    %v572 = vadd.f32 %v522, %v571
    %573 = vmatmul.bf16.gmra.mxu0 %v538
    %v574 = vpop.f32.mrf.mxu0
    %v575 = vadd.f32 %v522, %v574
    %v576 = vpop.f32.mrf.mxu0
    %v577 = vadd.f32 %v522, %v576
    %578 = vmatmul.bf16.gmra.mxu0 %v541
    %v579 = vpop.f32.mrf.mxu0
    %v580 = vadd.f32 %v522, %v579
    %v581 = vpop.f32.mrf.mxu0
    %v582 = vadd.f32 %v522, %v581
    %583 = vmatmul.bf16.gmra.mxu0 %v544
    %v584 = vpop.f32.mrf.mxu0
    %v585 = vadd.f32 %v522, %v584
    %v586 = vpop.f32.mrf.mxu0
    %v587 = vadd.f32 %v522, %v586
    %588 = vmatmul.bf16.gmra.mxu0 %v547
    %v589 = vpop.f32.mrf.mxu0
    %v590 = vadd.f32 %v522, %v589
    %v591 = vpop.f32.mrf.mxu0
    %v592 = vadd.f32 %v522, %v591
    %593 = vmatmul.bf16.gmra.mxu0 %v550
    %v594 = vpop.f32.mrf.mxu0
    %v595 = vadd.f32 %v522, %v594
    %v596 = vpop.f32.mrf.mxu0
    %v597 = vadd.f32 %v522, %v596
    %598 = vmatmul.bf16.gmra.mxu0 %v553
    %v599 = vpop.f32.mrf.mxu0
    %v600 = vadd.f32 %v522, %v599
    %v601 = vpop.f32.mrf.mxu0
    %v602 = vadd.f32 %v522, %v601
    %603 = vdwg.mxu0
    %v604 = vpack.c.bf16 %v565, %v565
    %v605 = vpack.c.bf16 %v567, %v567
    %v606 = vpack.c.bf16 %v570, %v570
    %v607 = vpack.c.bf16 %v572, %v572
    %v608 = vpack.c.bf16 %v575, %v575
    %v609 = vpack.c.bf16 %v577, %v577
    %v610 = vpack.c.bf16 %v580, %v580
    %v611 = vpack.c.bf16 %v582, %v582
    %v612 = vpack.c.bf16 %v585, %v585
    %v613 = vpack.c.bf16 %v587, %v587
    %v614 = vpack.c.bf16 %v590, %v590
    %v615 = vpack.c.bf16 %v592, %v592
    %v616 = vpack.c.bf16 %v595, %v595
    %v617 = vpack.c.bf16 %v597, %v597
    %v618 = vpack.c.bf16 %v600, %v600
    %v619 = vpack.c.bf16 %v602, %v602
    %620 = vst [vmem:[#allocation2] sm:$0xf] %v604
    %621 = vst [vmem:[#allocation2 + $0x4] sm:$0xf] %v605
    %622 = vst [vmem:[#allocation2 + $0x8] sm:$0xf] %v606
    %623 = vst [vmem:[#allocation2 + $0xc] sm:$0xf] %v607
    %624 = vst [vmem:[#allocation2 + $0x10] sm:$0xf] %v608
    %625 = vst [vmem:[#allocation2 + $0x14] sm:$0xf] %v609
    %626 = vst [vmem:[#allocation2 + $0x18] sm:$0xf] %v610
    %627 = vst [vmem:[#allocation2 + $0x1c] sm:$0xf] %v611
    %628 = vst [vmem:[#allocation2 + $0x20] sm:$0xf] %v612
    %629 = vst [vmem:[#allocation2 + $0x24] sm:$0xf] %v613
    %630 = vst [vmem:[#allocation2 + $0x28] sm:$0xf] %v614
    %631 = vst [vmem:[#allocation2 + $0x2c] sm:$0xf] %v615
    %632 = vst [vmem:[#allocation2 + $0x30] sm:$0xf] %v616
    %633 = vst [vmem:[#allocation2 + $0x34] sm:$0xf] %v617
    %634 = vst [vmem:[#allocation2 + $0x38] sm:$0xf] %v618
    %635 = vst [vmem:[#allocation2 + $0x3c] sm:$0xf] %v619
    %644 = vrot.lane.b32.xlu0 %v513, 112
    %v645 = vpop.permute.xlu0 %644
    %646 = vrot.lane.b32.xlu0 %v514, 112
    %v647 = vpop.permute.xlu0 %646
    %648 = vrot.lane.b32.xlu0 %v515, 112
    %v649 = vpop.permute.xlu0 %648
    %650 = vrot.lane.b32.xlu0 %v516, 112
    %v651 = vpop.permute.xlu0 %650
    %652 = vrot.lane.b32.xlu0 %v517, 112
    %v653 = vpop.permute.xlu0 %652
    %654 = vrot.lane.b32.xlu0 %v518, 112
    %v655 = vpop.permute.xlu0 %654
    %656 = vrot.lane.b32.xlu0 %v519, 112
    %v657 = vpop.permute.xlu0 %656
    %658 = vrot.lane.b32.xlu0 %v520, 112
    %v659 = vpop.permute.xlu0 %658
    %v661 = vsel %vm530, %v645, 0
    %v664 = vsel %vm530, %v647, 0
    %v667 = vsel %vm530, %v649, 0
    %v670 = vsel %vm530, %v651, 0
    %v673 = vsel %vm530, %v653, 0
    %v676 = vsel %vm530, %v655, 0
    %v679 = vsel %vm530, %v657, 0
    %v682 = vsel %vm530, %v659, 0
    %684 = vmatpush.bf16.msra.mxu0 0
    %685 = vmatpush.bf16.msra.mxu0 0
    %686 = vmatpush.bf16.msra.mxu0 0
    %687 = vmatpush.bf16.msra.mxu0 0
    %688 = vmatpush.bf16.msra.mxu0 0
    %689 = vmatpush.bf16.msra.mxu0 0
    %690 = vmatpush.bf16.msra.mxu0 0
    %691 = vmatpush.bf16.msra.mxu0 %v528
    %692 = vmatmul.bf16.gmra.mxu0 %v661
    %v693 = vpop.f32.mrf.mxu0
    %v694 = vadd.f32 %v522, %v693
    %v695 = vpop.f32.mrf.mxu0
    %v696 = vadd.f32 %v522, %v695
    %697 = vmatmul.bf16.gmra.mxu0 %v664
    %v698 = vpop.f32.mrf.mxu0
    %v699 = vadd.f32 %v522, %v698
    %v700 = vpop.f32.mrf.mxu0
    %v701 = vadd.f32 %v522, %v700
    %702 = vmatmul.bf16.gmra.mxu0 %v667
    %v703 = vpop.f32.mrf.mxu0
    %v704 = vadd.f32 %v522, %v703
    %v705 = vpop.f32.mrf.mxu0
    %v706 = vadd.f32 %v522, %v705
    %707 = vmatmul.bf16.gmra.mxu0 %v670
    %v708 = vpop.f32.mrf.mxu0
    %v709 = vadd.f32 %v522, %v708
    %v710 = vpop.f32.mrf.mxu0
    %v711 = vadd.f32 %v522, %v710
    %712 = vmatmul.bf16.gmra.mxu0 %v673
    %v713 = vpop.f32.mrf.mxu0
    %v714 = vadd.f32 %v522, %v713
    %v715 = vpop.f32.mrf.mxu0
    %v716 = vadd.f32 %v522, %v715
    %717 = vmatmul.bf16.gmra.mxu0 %v676
    %v718 = vpop.f32.mrf.mxu0
    %v719 = vadd.f32 %v522, %v718
    %v720 = vpop.f32.mrf.mxu0
    %v721 = vadd.f32 %v522, %v720
    %722 = vmatmul.bf16.gmra.mxu0 %v679
    %v723 = vpop.f32.mrf.mxu0
    %v724 = vadd.f32 %v522, %v723
    %v725 = vpop.f32.mrf.mxu0
    %v726 = vadd.f32 %v522, %v725
    %727 = vmatmul.bf16.gmra.mxu0 %v682
    %v728 = vpop.f32.mrf.mxu0
    %v729 = vadd.f32 %v522, %v728
    %v730 = vpop.f32.mrf.mxu0
    %v731 = vadd.f32 %v522, %v730
    %732 = vdwg.mxu0
    %v733 = vpack.c.bf16 %v694, %v694
    %v734 = vpack.c.bf16 %v696, %v696
    %v735 = vpack.c.bf16 %v699, %v699
    %v736 = vpack.c.bf16 %v701, %v701
    %v737 = vpack.c.bf16 %v704, %v704
    %v738 = vpack.c.bf16 %v706, %v706
    %v739 = vpack.c.bf16 %v709, %v709
    %v740 = vpack.c.bf16 %v711, %v711
    %v741 = vpack.c.bf16 %v714, %v714
    %v742 = vpack.c.bf16 %v716, %v716
    %v743 = vpack.c.bf16 %v719, %v719
    %v744 = vpack.c.bf16 %v721, %v721
    %v745 = vpack.c.bf16 %v724, %v724
    %v746 = vpack.c.bf16 %v726, %v726
    %v747 = vpack.c.bf16 %v729, %v729
    %v748 = vpack.c.bf16 %v731, %v731
    %s749 = scalar_lea.vmem [#allocation2], 64
    %750 = vst [vmem:[%s749] sm:$0xf] %v733
    %751 = vst [vmem:[%s749 + $0x4] sm:$0xf] %v734
    %752 = vst [vmem:[%s749 + $0x8] sm:$0xf] %v735
    %753 = vst [vmem:[%s749 + $0xc] sm:$0xf] %v736
    %754 = vst [vmem:[%s749 + $0x10] sm:$0xf] %v737
    %755 = vst [vmem:[%s749 + $0x14] sm:$0xf] %v738
    %756 = vst [vmem:[%s749 + $0x18] sm:$0xf] %v739
    %757 = vst [vmem:[%s749 + $0x1c] sm:$0xf] %v740
    %758 = vst [vmem:[%s749 + $0x20] sm:$0xf] %v741
    %759 = vst [vmem:[%s749 + $0x24] sm:$0xf] %v742
    %760 = vst [vmem:[%s749 + $0x28] sm:$0xf] %v743
    %761 = vst [vmem:[%s749 + $0x2c] sm:$0xf] %v744
    %762 = vst [vmem:[%s749 + $0x30] sm:$0xf] %v745
    %763 = vst [vmem:[%s749 + $0x34] sm:$0xf] %v746
    %764 = vst [vmem:[%s749 + $0x38] sm:$0xf] %v747
    %765 = vst [vmem:[%s749 + $0x3c] sm:$0xf] %v748
    // Predicated region
    $region30: #{cnn_encoder3_forward.1} parent=1 // pred_check
      _
    $region31: #{cnn_encoder3_forward.1} parent=1 // pred_check_branch
      %767 = sbr.rel (0) target = $region33
    $region32: #{cnn_encoder3_forward.1} parent=1 // pred_region
      %769 = vsyncadd [#allocation3], 0
      %s770 = sshll.u32 [#allocation2], 4
      %s771 = int_to_ptr.vmem [resolvable:$true] %s770
      %s772 = sshll.u32 %s7, 4
      %s773 = int_to_ptr.hbm [resolvable:$true] %s772
      %778 = dma.vmem_to_hbm [thread:$0]  %s771, 2048, %s773, [#allocation3], 64, 64, 4
    $region33: #{cnn_encoder3_forward.1} parent=1 // pred_fallthru
      _
    // Predicated region
    $region34: #{cnn_encoder3_forward.1} parent=1 // pred_check
      _
    $region35: #{cnn_encoder3_forward.1} parent=1 // pred_check_branch
      %780 = sbr.rel (0) target = $region37
    $region36: #{cnn_encoder3_forward.1} parent=1 // pred_region
      %782 = dma.done [#allocation3], 2048
    $region37: #{cnn_encoder3_forward.1} parent=1 // pred_fallthru
      _
    %783 = vsyncpa [#allocation3], 1

</llo_original>
